<compile_context>
chip_gen: v6e
topology: v6e:2x2x1
jax: 0.10.0
libtpu: 0.0.40
codegen_flags: <defaults>
</compile_context>

<pallas_src>
import jax
import jax.numpy as jnp
from jax.experimental import pallas as pl
from jax.experimental.pallas import tpu as pltpu


def _linreg_kernel(xT_ref, w_ref, b_ref, o_ref):
    # xT_ref: (F, TILE_B) VMEM  -- batch on the lane axis
    # w_ref:  (F,)  SMEM        -- weight scalars
    # b_ref:  (1,)  SMEM        -- bias scalar
    # o_ref:  (1, TILE_B) VMEM  -- lane-dense output tile (unmasked stores)
    num_features = xT_ref.shape[0]
    tile_b = o_ref.shape[1]

    # Accumulator initialized with the bias (added exactly once per column).
    acc = jnp.full((1, tile_b), b_ref[0], dtype=jnp.float32)

    # F broadcast-MACs on the VPU.  F is a small static constant, so a plain
    # unrolled loop is fine; no XLU reduce, no relayout, no MXU.
    for f in range(num_features):
        acc = acc + w_ref[f] * xT_ref[pl.ds(f, 1), :]

    o_ref[...] = acc.astype(o_ref.dtype)


def _vmem_physical_bytes():
    """Per-generation VMEM capacity; conservative fallback if the query fails."""
    try:
        info = pltpu.get_tpu_info()
        cap = getattr(info, "vmem_capacity_bytes", None)
        if cap:
            return int(cap)
    except Exception:
        pass
    return 64 << 20  # v7x per-TC figure; safe lower bound on every generation


def _round_up(n, m):
    return ((n + m - 1) // m) * m


def _choose_tile_b(batch_pad, num_features, tile_budget_bytes):
    # VMEM bytes per batch column: double-buffered x column (F * 4 bytes)
    # plus double-buffered output element (4 bytes).
    per_col = 2 * (num_features * 4 + 4)
    vmem_cap_cols = max(128, tile_budget_bytes // per_col)
    # Target ~4 MiB of x streamed per grid step (pure HBM-streaming kernel).
    target_cols = max(128, (4 << 20) // max(num_features * 4, 1))
    tile_b = min(target_cols, vmem_cap_cols, batch_pad)
    return max(128, (tile_b // 128) * 128)


def linear_regressor_forward(x, w, b, *, min_pallas_bytes=1 << 18,
                             force_pallas=False):
    """forward(x) = x @ w + b.   x: (B, F), w: (F, 1), b: (1,) -> (B, 1)."""
    B, F = x.shape
    assert w.shape == (F, 1) and b.shape == (1,)

    # Tiny problems: let XLA fuse the matvec; the custom kernel only adds
    # dispatch/DMA latency at these sizes.
    if not force_pallas and (B * F * x.dtype.itemsize) < min_pallas_bytes:
        return x @ w + b

    # --- layout plumbing (wrapper side) --------------------------------------
    # Batch on the lane axis.  For the module's actual use in sinetest (F == 1)
    # this transpose is a free reshape; for small F it is a cheap one-off pass
    # that removes the 16x lane-padding waste inside the kernel.
    x_t = jnp.transpose(x)                         # (F, B)
    w_vec = w.reshape(F).astype(jnp.float32)       # (F,) SMEM scalars
    b_vec = b.reshape(1).astype(jnp.float32)       # (1,) SMEM scalar

    # --- per-generation VMEM budget & streaming tile size ---------------------
    vmem_physical = _vmem_physical_bytes()
    vmem_limit = vmem_physical // 2                # scoped limit we request
    tile_budget = vmem_limit // 2                  # headroom for Mosaic scratch

    batch_pad128 = _round_up(B, 128)
    tile_b = _choose_tile_b(batch_pad128, F, tile_budget)
    grid_n = _round_up(batch_pad128, tile_b) // tile_b
    batch_pad = grid_n * tile_b
    if batch_pad != B:
        # Pad the batch so every tile is full; padded columns only see their
        # own (zero) inputs and are sliced off below.
        x_t = jnp.pad(x_t, ((0, 0), (0, batch_pad - B)))

    out = pl.pallas_call(
        _linreg_kernel,
        out_shape=jax.ShapeDtypeStruct((1, batch_pad), x.dtype),
        grid=(grid_n,),
        in_specs=[
            # TODO(synk): sweep pipeline_mode=pl.Buffered(3) here if a trace
            # still shows exposed DMA between the (nearly compute-free) steps.
            pl.BlockSpec((F, tile_b), lambda i: (0, i)),
            pl.BlockSpec(memory_space=pltpu.MemorySpace.SMEM),
            pl.BlockSpec(memory_space=pltpu.MemorySpace.SMEM),
        ],
        out_specs=pl.BlockSpec((1, tile_b), lambda i: (0, i)),
        compiler_params=pltpu.CompilerParams(
            # TODO(synk): if v7x profiling shows one TensorCore idle, switch
            # this axis to pltpu.CORE_PARALLEL (or pl.core_map over
            # pltpu.create_tensorcore_mesh) so both TCs stream half the batch.
            dimension_semantics=("parallel",),
            vmem_limit_bytes=vmem_limit,
        ),
    )(x_t, w_vec, b_vec)

    return out[0, :B].reshape(B, 1)


if __name__ == "__main__":
    key = jax.random.PRNGKey(0)
    k_w1, k_x1, k_w8, k_x8, k_xb = jax.random.split(key, 5)

    sigma = 0.05
    batch = 32          # functiondataload default batch_size

    # --- Case 1: the module as used in sinetest.py (inputs = 1) --------------
    w1 = sigma * jax.random.normal(k_w1, (1, 1), dtype=jnp.float32)
    b1 = jnp.zeros((1,), dtype=jnp.float32)
    x1 = 2.0 * jax.random.uniform(k_x1, (batch, 1), dtype=jnp.float32) - 1.0
    out1 = jax.block_until_ready(
        linear_regressor_forward(x1, w1, b1, force_pallas=True))
    ref1 = x1 @ w1 + b1
    assert out1.shape == (batch, 1)
    assert jnp.allclose(out1, ref1, atol=1e-5, rtol=1e-5)

    # --- Case 2: multi-feature head (inputs = 8) ------------------------------
    inputs = 8
    w8 = sigma * jax.random.normal(k_w8, (inputs, 1), dtype=jnp.float32)
    b8 = jnp.full((1,), 0.25, dtype=jnp.float32)
    x8 = 2.0 * jax.random.uniform(k_x8, (batch, inputs), dtype=jnp.float32) - 1.0
    out8 = jax.block_until_ready(
        linear_regressor_forward(x8, w8, b8, force_pallas=True))
    ref8 = x8 @ w8 + b8
    assert out8.shape == (batch, 1)
    assert jnp.allclose(out8, ref8, atol=1e-5, rtol=1e-5)

    # --- Case 3: non-128-multiple batch (exercises padding + tiled path) ------
    big_batch = 1000
    xb = 2.0 * jax.random.uniform(k_xb, (big_batch, inputs), dtype=jnp.float32) - 1.0
    outb = jax.block_until_ready(
        linear_regressor_forward(xb, w8, b8, force_pallas=True))
    refb = xb @ w8 + b8
    assert outb.shape == (big_batch, 1)
    assert jnp.allclose(outb, refb, atol=1e-5, rtol=1e-5)

    print("KERNEL_OK")
</pallas_src>

<mosaic_0001>
module attributes {stable_mosaic.version = 11 : i64} {
  func.func @_linreg_kernel(%arg0: i32, %arg1: memref<1x128xf32, #tpu.memory_space<vmem>>, %arg2: memref<1xf32, #tpu.memory_space<smem>>, %arg3: memref<1xf32, #tpu.memory_space<smem>>, %arg4: memref<1x128xf32, #tpu.memory_space<vmem>>) attributes {dimension_semantics = [#tpu.dimension_semantics<parallel>], iteration_bounds = array<i64: 1>, scalar_prefetch = 0 : i64, scratch_operands = 0 : i64, tpu.core_type = #tpu.core_type<tc>, window_params = [{transform_indices = @transform_0, window_bounds = array<i64: 1, 128>}, {transform_indices = @transform_1, window_bounds = array<i64: 1>}, {transform_indices = @transform_2, window_bounds = array<i64: 1>}, {transform_indices = @transform_3, window_bounds = array<i64: 1, 128>}]} {
    %c0 = arith.constant 0 : index
    %0 = memref.load %arg3[%c0] : memref<1xf32, #tpu.memory_space<smem>>
    %1 = vector.broadcast %0 : f32 to vector<1x128xf32>
    %c0_0 = arith.constant 0 : index
    %2 = memref.load %arg2[%c0_0] : memref<1xf32, #tpu.memory_space<smem>>
    %c0_1 = arith.constant 0 : index
    %c0_2 = arith.constant 0 : index
    %3 = vector.load %arg1[%c0_1, %c0_2] : memref<1x128xf32, #tpu.memory_space<vmem>>, vector<1x128xf32>
    %4 = vector.broadcast %2 : f32 to vector<1x128xf32>
    %5 = arith.mulf %4, %3 : vector<1x128xf32>
    %6 = arith.addf %1, %5 : vector<1x128xf32>
    %c0_3 = arith.constant 0 : index
    %c0_4 = arith.constant 0 : index
    %7 = vector.load %arg4[%c0_3, %c0_4] : memref<1x128xf32, #tpu.memory_space<vmem>>, vector<1x128xf32>
    tpu.vector_store %arg4[%c0_3, %c0_4], %6 {strides = array<i32>} : memref<1x128xf32, #tpu.memory_space<vmem>>, vector<1x128xf32>,
    return
  }
  func.func @transform_0(%arg0: i32) -> (i32, i32) {
    %c0_i32 = arith.constant 0 : i32
    %c0_i32_0 = arith.constant 0 : i32
    return %c0_i32, %arg0 : i32, i32
  }
  func.func @transform_1(%arg0: i32) -> i32 {
    %c0_i32 = arith.constant 0 : i32
    %c0_i32_0 = arith.constant 0 : i32
    return %c0_i32 : i32
  }
  func.func @transform_2(%arg0: i32) -> i32 {
    %c0_i32 = arith.constant 0 : i32
    %c0_i32_0 = arith.constant 0 : i32
    return %c0_i32 : i32
  }
  func.func @transform_3(%arg0: i32) -> (i32, i32) {
    %c0_i32 = arith.constant 0 : i32
    %c0_i32_0 = arith.constant 0 : i32
    return %c0_i32, %arg0 : i32, i32
  }
}

</mosaic_0001>

<llo_original>
// kernel: tpu_custom_call.1
$region0: #{tpu_custom_call.1}
  #allocation0 [shape = 'u32[]', space=smem, size = 0x4, offset = 0x4, fixed_abs, tag = 'smem constant byte address 0x4 - core index']
  #allocation1 [shape = 'u32[144,128]{1,0:T(1,128)}', space=vmem, size = 0x12000, scoped, tag = 'internal scratch']
  #allocation2 [shape = 'f32[1]{0:T(128)S(6)}', space=smem, size = 0x200, scoped, tag = 'scoped memory for tpu_custom_call.1']
  #allocation3 [shape = 'f32[1]{0:T(128)S(6)}', space=smem, size = 0x200, scoped, tag = 'scoped memory for tpu_custom_call.1']
  %s0 = inlined_call_operand.vmem [shape: f32[1,128], index: 0, kind: input, shape index: {}]
  %s1 = inlined_call_operand.<no memory space> [shape: f32[1], index: 1, kind: input, shape index: {}]
  %s2 = inlined_call_operand.<no memory space> [shape: f32[1], index: 2, kind: input, shape index: {}]
  %s3 = inlined_call_operand.hbm [shape: f32[1,128], index: 3, kind: output, shape index: {}]
  %s4 = sld [smem:[#allocation0]]
  $region22: #{tpu_custom_call.1} parent=0
    _
  %s6 = ssub.s32 1, %s4
  %s7 = scalar_select 0, %s6, %s4
  %8 = sst [smem:[#allocation2]] %s1
  %9 = sst [smem:[#allocation3]] %s2
  $region1: #{tpu_custom_call.1} parent=0
    #allocation4 [shape = 'u8[512]{0}', space=vmem, size = 0x400, scoped, tag = 'output window, operand 0, single buffered']
    #allocation5 [shape = 's32[1]{0}', space=sflag, size = 0x4, scoped, tag = 'scoped memory for tpu_custom_call.1']
    %10 = vsyncpa [#allocation5], 0
    // Predicated region
    $region2: #{tpu_custom_call.1} parent=1 // pred_check
      _
    $region3: #{tpu_custom_call.1} parent=1 // pred_check_branch
      %12 = sbr.rel (0) target = $region5
    $region4: #{tpu_custom_call.1} parent=1 // pred_region
      _
    $region5: #{tpu_custom_call.1} parent=1 // pred_fallthru
      _
    // Predicated region
    $region6: #{tpu_custom_call.1} parent=1 // pred_check
      _
    $region7: #{tpu_custom_call.1} parent=1 // pred_check_branch
      %14 = sbr.rel (0) target = $region9
    $region8: #{tpu_custom_call.1} parent=1 // pred_region
      _
    $region9: #{tpu_custom_call.1} parent=1 // pred_fallthru
      _
    // Predicated region
    $region10: #{tpu_custom_call.1} parent=1 // pred_check
      _
    $region11: #{tpu_custom_call.1} parent=1 // pred_check_branch
      %16 = sbr.rel (0) target = $region13
    $region12: #{tpu_custom_call.1} parent=1 // pred_region
      _
    $region13: #{tpu_custom_call.1} parent=1 // pred_fallthru
      _
    %s17 = sld [smem:[#allocation3]]
    %v18 = vstv %s17
    %s19 = sld [smem:[#allocation2]]
    %v20 = vld [vmem:[%s0] sm:$0x1]
    %v21 = vstv %s19
    %v22 = vmul.f32 %v21, %v20
    %v23 = vadd.f32 %v18, %v22
    %24 = vst [vmem:[#allocation4] sm:$0x1] %v23
    // Predicated region
    $region14: #{tpu_custom_call.1} parent=1 // pred_check
      _
    $region15: #{tpu_custom_call.1} parent=1 // pred_check_branch
      %26 = sbr.rel (0) target = $region17
    $region16: #{tpu_custom_call.1} parent=1 // pred_region
      %s28 = ssub.s32 16, 16
      %29 = vsyncadd [#allocation5], %s28
      %s31 = sshll.u32 [#allocation4], 4
      %s32 = int_to_ptr.vmem [resolvable:$true] %s31
      %34 = dma.vmem_to_hbm [thread:$0]  %s32, 16, %s3, [#allocation5]
    $region17: #{tpu_custom_call.1} parent=1 // pred_fallthru
      _
    // Predicated region
    $region18: #{tpu_custom_call.1} parent=1 // pred_check
      _
    $region19: #{tpu_custom_call.1} parent=1 // pred_check_branch
      %36 = sbr.rel (0) target = $region21
    $region20: #{tpu_custom_call.1} parent=1 // pred_region
      %37 = dma.done [#allocation5], 16
    $region21: #{tpu_custom_call.1} parent=1 // pred_fallthru
      _
    %38 = vsyncpa [#allocation5], 1

</llo_original>
